<compile_context>
chip_gen: v7x
topology: tpu7x:2x2x1
jax: 0.10.0
libtpu: 0.0.40
codegen_flags: <defaults>
</compile_context>

<pallas_src>
import functools

import jax
import jax.numpy as jnp
from jax import lax
from jax.experimental import pallas as pl
from jax.experimental.pallas import tpu as pltpu


def cross_attention_kernel(a_ref, b_ref, wa_ref, ba_ref, wb_ref, bb_ref,
                           oa_ref, ob_ref, *, compute_dtype):
    Bblk, I, Da = a_ref.shape
    _, J, Db = b_ref.shape
    H = wa_ref.shape[1]

    a = a_ref[...]                                   # (Bblk, I, Da)  f32
    b = b_ref[...]                                   # (Bblk, J, Db)  f32
    a_mm = a.astype(compute_dtype)
    b_mm = b.astype(compute_dtype)
    wa = wa_ref[...].astype(compute_dtype)           # (Da, H)
    wb = wb_ref[...].astype(compute_dtype)           # (Db, H)

    # Fused linear projections: collapse (Bblk, I) -> one big-M MXU matmul.
    mapped_a = (jnp.dot(a_mm.reshape(Bblk * I, Da), wa,
                        preferred_element_type=jnp.float32)
                + ba_ref[...]).reshape(Bblk, I, H)   # (Bblk, I, H)  f32
    mapped_b = (jnp.dot(b_mm.reshape(Bblk * J, Db), wb,
                        preferred_element_type=jnp.float32)
                + bb_ref[...]).reshape(Bblk, J, H)   # (Bblk, J, H)  f32

    # scores_{bij} = <mapped_a_bi, mapped_b_bj>  (contract last dims, no .T)
    scores = jnp.einsum('bih,bjh->bij',
                        mapped_a.astype(compute_dtype),
                        mapped_b.astype(compute_dtype),
                        preferred_element_type=jnp.float32)   # (Bblk, I, J)

    # attn01 = softmax over j (rows), in f32.
    m1 = jnp.max(scores, axis=-1, keepdims=True)
    e1 = jnp.exp(scores - m1)
    attn01 = e1 * pl.reciprocal(jnp.sum(e1, axis=-1, keepdims=True), approx=True)

    # attn10 = softmax(scores^T, axis=-1), computed as a column softmax of
    # scores — the transpose is never materialized.
    # attn10_t[b,i,j] == attn10[b,j,i].
    m2 = jnp.max(scores, axis=-2, keepdims=True)
    e2 = jnp.exp(scores - m2)
    attn10_t = e2 * pl.reciprocal(jnp.sum(e2, axis=-2, keepdims=True), approx=True)

    # output_a[b] = attn01[b] @ input_b[b]                      -> (Bblk, I, Db)
    oa = jnp.einsum('bij,bjd->bid', attn01.astype(compute_dtype), b_mm,
                    preferred_element_type=jnp.float32)
    # output_b[b] = attn10[b] @ input_a[b] = attn10_t[b]^T @ input_a[b]:
    # transposed-LHS contraction on the MXU (contract the I axis of both).
    ob = lax.dot_general(attn10_t.astype(compute_dtype), a_mm,
                         dimension_numbers=(((1,), (1,)), ((0,), (0,))),
                         preferred_element_type=jnp.float32)   # (Bblk, J, Da)

    oa_ref[...] = oa.astype(oa_ref.dtype)
    ob_ref[...] = ob.astype(ob_ref.dtype)


def _round_up(x, m):
    return ((x + m - 1) // m) * m


def _block_vmem_bytes(Bblk, I, J, Dap, Dbp, Hp):
    """Rough per-grid-step VMEM footprint (f32, incl. double-buffered I/O)."""
    io = Bblk * (I * Dap + J * Dbp + I * Dbp + J * Dap) * 4 * 2  # 2x: dbl-buffer
    weights = (Dap * Hp + Dbp * Hp + 2 * Hp) * 4 * 2
    interm = Bblk * (I * Hp + J * Hp + 3 * I * J + I * Dbp + J * Dap) * 4
    return io + weights + interm


def cross_attention(input_a, input_b, wa_t, ba, wb_t, bb, *,
                    compute_dtype=jnp.float32, num_blocks=None):
    """input_a: (B, I, Da), input_b: (B, J, Db).
    wa_t: (Da, H), ba: (1, H), wb_t: (Db, H), bb: (1, H).

    compute_dtype: dtype of the matmul operands (bf16 recommended on v6e/v7x);
    softmax and accumulation are always f32.
    """
    B, I, Da = input_a.shape
    _, J, Db = input_b.shape
    H = wa_t.shape[1]

    # Lane-pad feature dims to multiples of 128 (zero padding is exact for the
    # projections, scores and the final attn @ input matmuls).
    Dap, Dbp, Hp = _round_up(Da, 128), _round_up(Db, 128), _round_up(H, 128)
    a_p = jnp.pad(input_a.astype(jnp.float32), ((0, 0), (0, 0), (0, Dap - Da)))
    b_p = jnp.pad(input_b.astype(jnp.float32), ((0, 0), (0, 0), (0, Dbp - Db)))
    wa_p = jnp.pad(wa_t.astype(jnp.float32), ((0, Dap - Da), (0, Hp - H)))
    wb_p = jnp.pad(wb_t.astype(jnp.float32), ((0, Dbp - Db), (0, Hp - H)))
    ba_p = jnp.pad(ba.astype(jnp.float32), ((0, 0), (0, Hp - H)))
    bb_p = jnp.pad(bb.astype(jnp.float32), ((0, 0), (0, Hp - H)))

    # Batch blocking: prefer 2 grid steps (both v7x TensorCores get a block;
    # single-TC chips just run them back-to-back, ~0.35 us extra).  Fall back
    # to more blocks only if a block would blow a conservative VMEM budget
    # (v7x has 64 MiB per TC).
    if num_blocks is None:
        budget = 40 << 20
        num_blocks = 2 if (B % 2 == 0 and B >= 2) else 1
        while (num_blocks < B
               and _block_vmem_bytes(B // num_blocks, I, J, Dap, Dbp, Hp) > budget):
            nb = num_blocks + 1
            while B % nb != 0:
                nb += 1
            num_blocks = nb
    assert B % num_blocks == 0
    Bblk = B // num_blocks

    out_shape = (
        jax.ShapeDtypeStruct((B, I, Dbp), jnp.float32),   # padded output_a
        jax.ShapeDtypeStruct((B, J, Dap), jnp.float32),   # padded output_b
    )

    grid_spec = pltpu.PrefetchScalarGridSpec(
        num_scalar_prefetch=0,
        grid=(num_blocks,),
        in_specs=[
            pl.BlockSpec((Bblk, I, Dap), lambda i: (i, 0, 0)),   # input_a
            pl.BlockSpec((Bblk, J, Dbp), lambda i: (i, 0, 0)),   # input_b
            pl.BlockSpec((Dap, Hp), lambda i: (0, 0)),           # Wa^T
            pl.BlockSpec((1, Hp), lambda i: (0, 0)),             # ba
            pl.BlockSpec((Dbp, Hp), lambda i: (0, 0)),           # Wb^T
            pl.BlockSpec((1, Hp), lambda i: (0, 0)),             # bb
        ],
        out_specs=(
            pl.BlockSpec((Bblk, I, Dbp), lambda i: (i, 0, 0)),
            pl.BlockSpec((Bblk, J, Dap), lambda i: (i, 0, 0)),
        ),
    )

    kernel = functools.partial(cross_attention_kernel,
                               compute_dtype=compute_dtype)
    out_a_p, out_b_p = pl.pallas_call(
        kernel,
        out_shape=out_shape,
        grid_spec=grid_spec,
        compiler_params=pltpu.CompilerParams(
            dimension_semantics=("parallel",),
            vmem_limit_bytes=48 << 20),
    )(a_p, b_p, wa_p, ba_p, wb_p, bb_p)

    # Slice off the lane padding (wrapper-side, cheap).
    return out_a_p[..., :Db], out_b_p[..., :Da]


def cross_attention_ref(input_a, input_b, wa_t, ba, wb_t, bb):
    """Pure-JAX reference matching the PyTorch forward."""
    mapped_a = jnp.einsum('bid,dh->bih', input_a, wa_t) + ba[0]
    mapped_b = jnp.einsum('bjd,dh->bjh', input_b, wb_t) + bb[0]
    scores = jnp.einsum('bih,bjh->bij', mapped_a, mapped_b)
    attn01 = jax.nn.softmax(scores, axis=-1)
    attn10 = jax.nn.softmax(jnp.swapaxes(scores, -2, -1), axis=-1)
    output_a = jnp.einsum('bij,bjd->bid', attn01, input_b)
    output_b = jnp.einsum('bji,bid->bjd', attn10, input_a)
    return output_a, output_b


if __name__ == "__main__":
    # Small shapes consistent with the module:
    #   input_a: (B, I, input_dim_a), input_b: (B, J, input_dim_b)
    B, I, Da = 2, 8, 32       # original: 16, 36, 192
    J, Db = 16, 8             # original: 192, 36
    H = 16                    # original hidden_dim: 64

    key = jax.random.PRNGKey(0)
    k1, k2, k3, k4, k5, k6 = jax.random.split(key, 6)

    input_a = jax.random.normal(k1, (B, I, Da), dtype=jnp.float32)
    input_b = jax.random.normal(k2, (B, J, Db), dtype=jnp.float32)

    # Deterministic nn.Linear-style init: U(-1/sqrt(fan_in), 1/sqrt(fan_in)).
    bound_a = 1.0 / (Da ** 0.5)
    bound_b = 1.0 / (Db ** 0.5)
    wa_t = jax.random.uniform(k3, (Da, H), jnp.float32, -bound_a, bound_a)
    ba = jax.random.uniform(k4, (1, H), jnp.float32, -bound_a, bound_a)
    wb_t = jax.random.uniform(k5, (Db, H), jnp.float32, -bound_b, bound_b)
    bb = jax.random.uniform(k6, (1, H), jnp.float32, -bound_b, bound_b)

    ref_a, ref_b = cross_attention_ref(input_a, input_b, wa_t, ba, wb_t, bb)

    # f32 matmul operands: tight check (only the approx reciprocal differs).
    out_a, out_b = cross_attention(input_a, input_b, wa_t, ba, wb_t, bb,
                                   compute_dtype=jnp.float32)
    jax.block_until_ready((out_a, out_b))
    assert out_a.shape == (B, I, Db) and out_b.shape == (B, J, Da)
    assert jnp.allclose(out_a, ref_a, atol=2e-3, rtol=2e-3)
    assert jnp.allclose(out_b, ref_b, atol=2e-3, rtol=2e-3)

    # bf16 matmul operands (v6e / v7x fast path): looser sanity check.
    out_a16, out_b16 = cross_attention(input_a, input_b, wa_t, ba, wb_t, bb,
                                       compute_dtype=jnp.bfloat16)
    jax.block_until_ready((out_a16, out_b16))
    assert jnp.allclose(out_a16, ref_a, atol=1e-1, rtol=1e-1)
    assert jnp.allclose(out_b16, ref_b, atol=1e-1, rtol=1e-1)

    print("KERNEL_OK")
</pallas_src>

<mosaic_0001>
module attributes {stable_mosaic.version = 11 : i64} {
  func.func @cross_attention_kernel(%arg0: i32, %arg1: memref<1x8x128xf32, #tpu.memory_space<vmem>>, %arg2: memref<1x16x128xf32, #tpu.memory_space<vmem>>, %arg3: memref<128x128xf32, #tpu.memory_space<vmem>>, %arg4: memref<1x128xf32, #tpu.memory_space<vmem>>, %arg5: memref<128x128xf32, #tpu.memory_space<vmem>>, %arg6: memref<1x128xf32, #tpu.memory_space<vmem>>, %arg7: memref<1x8x128xf32, #tpu.memory_space<vmem>>, %arg8: memref<1x16x128xf32, #tpu.memory_space<vmem>>) attributes {dimension_semantics = [#tpu.dimension_semantics<parallel>], iteration_bounds = array<i64: 2>, scalar_prefetch = 0 : i64, scratch_operands = 0 : i64, tpu.core_type = #tpu.core_type<tc>, window_params = [{transform_indices = @transform_0, window_bounds = array<i64: 1, 8, 128>}, {transform_indices = @transform_1, window_bounds = array<i64: 1, 16, 128>}, {pipeline_mode = #tpu.pipeline_mode<synchronous>, transform_indices = @transform_2, window_bounds = array<i64: 128, 128>}, {pipeline_mode = #tpu.pipeline_mode<synchronous>, transform_indices = @transform_3, window_bounds = array<i64: 1, 128>}, {pipeline_mode = #tpu.pipeline_mode<synchronous>, transform_indices = @transform_4, window_bounds = array<i64: 128, 128>}, {pipeline_mode = #tpu.pipeline_mode<synchronous>, transform_indices = @transform_5, window_bounds = array<i64: 1, 128>}, {transform_indices = @transform_6, window_bounds = array<i64: 1, 8, 128>}, {transform_indices = @transform_7, window_bounds = array<i64: 1, 16, 128>}]} {
    %c0 = arith.constant 0 : index
    %c0_0 = arith.constant 0 : index
    %c0_1 = arith.constant 0 : index
    %0 = vector.load %arg1[%c0, %c0_0, %c0_1] : memref<1x8x128xf32, #tpu.memory_space<vmem>>, vector<1x8x128xf32>
    %c0_2 = arith.constant 0 : index
    %c0_3 = arith.constant 0 : index
    %c0_4 = arith.constant 0 : index
    %1 = vector.load %arg2[%c0_2, %c0_3, %c0_4] : memref<1x16x128xf32, #tpu.memory_space<vmem>>, vector<1x16x128xf32>
    %c0_5 = arith.constant 0 : index
    %c0_6 = arith.constant 0 : index
    %2 = vector.load %arg3[%c0_5, %c0_6] : memref<128x128xf32, #tpu.memory_space<vmem>>, vector<128x128xf32>
    %c0_7 = arith.constant 0 : index
    %c0_8 = arith.constant 0 : index
    %3 = vector.load %arg5[%c0_7, %c0_8] : memref<128x128xf32, #tpu.memory_space<vmem>>, vector<128x128xf32>
    %4 = vector.shape_cast %0 : vector<1x8x128xf32> to vector<8x128xf32>
    %cst = arith.constant dense<0.000000e+00> : vector<8x128xf32>
    %5 = tpu.matmul %4, %2, %cst {dimension_numbers = #tpu.dot_dimension_numbers<[1], [0], [0], [1], [0, 0, 1, 1], [], []>} : vector<8x128xf32>, vector<128x128xf32>, vector<8x128xf32> -> vector<8x128xf32>
    %c0_9 = arith.constant 0 : index
    %c0_10 = arith.constant 0 : index
    %6 = vector.load %arg4[%c0_9, %c0_10] : memref<1x128xf32, #tpu.memory_space<vmem>>, vector<1x128xf32>
    %7 = vector.broadcast %6 : vector<1x128xf32> to vector<8x128xf32>
    %8 = arith.addf %5, %7 : vector<8x128xf32>
    %9 = vector.shape_cast %8 : vector<8x128xf32> to vector<1x8x128xf32>
    %10 = vector.shape_cast %1 : vector<1x16x128xf32> to vector<16x128xf32>
    %cst_11 = arith.constant dense<0.000000e+00> : vector<16x128xf32>
    %11 = tpu.matmul %10, %3, %cst_11 {dimension_numbers = #tpu.dot_dimension_numbers<[1], [0], [0], [1], [0, 0, 1, 1], [], []>} : vector<16x128xf32>, vector<128x128xf32>, vector<16x128xf32> -> vector<16x128xf32>
    %c0_12 = arith.constant 0 : index
    %c0_13 = arith.constant 0 : index
    %12 = vector.load %arg6[%c0_12, %c0_13] : memref<1x128xf32, #tpu.memory_space<vmem>>, vector<1x128xf32>
    %13 = vector.broadcast %12 : vector<1x128xf32> to vector<16x128xf32>
    %14 = arith.addf %11, %13 : vector<16x128xf32>
    %15 = vector.shape_cast %14 : vector<16x128xf32> to vector<1x16x128xf32>
    "tpu.trace_start"() <{level = 10 : i32, message = "bih,bjh->bij"}> : () -> ()
    %cst_14 = arith.constant dense<0.000000e+00> : vector<1x8x16xf32>
    %16 = tpu.matmul %9, %15, %cst_14 {dimension_numbers = #tpu.dot_dimension_numbers<[2], [2], [1], [1], [0, 0, 0, 1, 1, 1], [0], [0]>} : vector<1x8x128xf32>, vector<1x16x128xf32>, vector<1x8x16xf32> -> vector<1x8x16xf32>
    "tpu.trace_stop"() : () -> ()
    %cst_15 = arith.constant dense<0xFF800000> : vector<1x8xf32>
    %17 = vector.multi_reduction <maximumf>, %16, %cst_15 [2] : vector<1x8x16xf32> to vector<1x8xf32>
    %18 = vector.shape_cast %17 : vector<1x8xf32> to vector<1x8x1xf32>
    %19 = vector.broadcast %18 : vector<1x8x1xf32> to vector<1x8x16xf32>
    %20 = arith.subf %16, %19 : vector<1x8x16xf32>
    %21 = math.exp %20 : vector<1x8x16xf32>
    %cst_16 = arith.constant dense<0.000000e+00> : vector<1x8xf32>
    %22 = vector.multi_reduction <add>, %21, %cst_16 [2] : vector<1x8x16xf32> to vector<1x8xf32>
    %23 = vector.shape_cast %22 : vector<1x8xf32> to vector<1x8x1xf32>
    %24 = tpu.reciprocal %23 {approx = true} : vector<1x8x1xf32> -> vector<1x8x1xf32>
    %25 = vector.broadcast %24 : vector<1x8x1xf32> to vector<1x8x16xf32>
    %26 = arith.mulf %21, %25 : vector<1x8x16xf32>
    %cst_17 = arith.constant dense<0xFF800000> : vector<1x16xf32>
    %27 = vector.multi_reduction <maximumf>, %16, %cst_17 [1] : vector<1x8x16xf32> to vector<1x16xf32>
    %28 = vector.shape_cast %27 : vector<1x16xf32> to vector<1x1x16xf32>
    %29 = vector.broadcast %28 : vector<1x1x16xf32> to vector<1x8x16xf32>
    %30 = arith.subf %16, %29 : vector<1x8x16xf32>
    %31 = math.exp %30 : vector<1x8x16xf32>
    %cst_18 = arith.constant dense<0.000000e+00> : vector<1x16xf32>
    %32 = vector.multi_reduction <add>, %31, %cst_18 [1] : vector<1x8x16xf32> to vector<1x16xf32>
    %33 = vector.shape_cast %32 : vector<1x16xf32> to vector<1x1x16xf32>
    %34 = tpu.reciprocal %33 {approx = true} : vector<1x1x16xf32> -> vector<1x1x16xf32>
    %35 = vector.broadcast %34 : vector<1x1x16xf32> to vector<1x8x16xf32>
    %36 = arith.mulf %31, %35 : vector<1x8x16xf32>
    "tpu.trace_start"() <{level = 10 : i32, message = "bij,bjd->bid"}> : () -> ()
    %cst_19 = arith.constant dense<0.000000e+00> : vector<1x8x128xf32>
    %37 = tpu.matmul %26, %1, %cst_19 {dimension_numbers = #tpu.dot_dimension_numbers<[2], [1], [1], [2], [0, 0, 0, 1, 1, 2], [0], [0]>} : vector<1x8x16xf32>, vector<1x16x128xf32>, vector<1x8x128xf32> -> vector<1x8x128xf32>
    "tpu.trace_stop"() : () -> ()
    %cst_20 = arith.constant dense<0.000000e+00> : vector<1x16x128xf32>
    %38 = tpu.matmul %36, %0, %cst_20 {dimension_numbers = #tpu.dot_dimension_numbers<[1], [1], [2], [2], [0, 0, 0, 2, 1, 2], [0], [0]>} : vector<1x8x16xf32>, vector<1x8x128xf32>, vector<1x16x128xf32> -> vector<1x16x128xf32>
    %c0_21 = arith.constant 0 : index
    %c0_22 = arith.constant 0 : index
    %c0_23 = arith.constant 0 : index
    %39 = vector.load %arg7[%c0_21, %c0_22, %c0_23] : memref<1x8x128xf32, #tpu.memory_space<vmem>>, vector<1x8x128xf32>
    tpu.vector_store %arg7[%c0_21, %c0_22, %c0_23], %37 {strides = array<i32>} : memref<1x8x128xf32, #tpu.memory_space<vmem>>, vector<1x8x128xf32>,
    %c0_24 = arith.constant 0 : index
    %c0_25 = arith.constant 0 : index
    %c0_26 = arith.constant 0 : index
    %40 = vector.load %arg8[%c0_24, %c0_25, %c0_26] : memref<1x16x128xf32, #tpu.memory_space<vmem>>, vector<1x16x128xf32>
    tpu.vector_store %arg8[%c0_24, %c0_25, %c0_26], %38 {strides = array<i32>} : memref<1x16x128xf32, #tpu.memory_space<vmem>>, vector<1x16x128xf32>,
    return
  }
  func.func @transform_0(%arg0: i32) -> (i32, i32, i32) {
    %c0_i32 = arith.constant 0 : i32
    %c0_i32_0 = arith.constant 0 : i32
    %c0_i32_1 = arith.constant 0 : i32
    return %arg0, %c0_i32, %c0_i32_0 : i32, i32, i32
  }
  func.func @transform_1(%arg0: i32) -> (i32, i32, i32) {
    %c0_i32 = arith.constant 0 : i32
    %c0_i32_0 = arith.constant 0 : i32
    %c0_i32_1 = arith.constant 0 : i32
    return %arg0, %c0_i32, %c0_i32_0 : i32, i32, i32
  }
  func.func @transform_2(%arg0: i32) -> (i32, i32) {
    %c0_i32 = arith.constant 0 : i32
    %c0_i32_0 = arith.constant 0 : i32
    %c0_i32_1 = arith.constant 0 : i32
    return %c0_i32, %c0_i32_0 : i32, i32
  }
  func.func @transform_3(%arg0: i32) -> (i32, i32) {
    %c0_i32 = arith.constant 0 : i32
    %c0_i32_0 = arith.constant 0 : i32
    %c0_i32_1 = arith.constant 0 : i32
    return %c0_i32, %c0_i32_0 : i32, i32
  }
  func.func @transform_4(%arg0: i32) -> (i32, i32) {
    %c0_i32 = arith.constant 0 : i32
    %c0_i32_0 = arith.constant 0 : i32
    %c0_i32_1 = arith.constant 0 : i32
    return %c0_i32, %c0_i32_0 : i32, i32
  }
  func.func @transform_5(%arg0: i32) -> (i32, i32) {
    %c0_i32 = arith.constant 0 : i32
    %c0_i32_0 = arith.constant 0 : i32
    %c0_i32_1 = arith.constant 0 : i32
    return %c0_i32, %c0_i32_0 : i32, i32
  }
  func.func @transform_6(%arg0: i32) -> (i32, i32, i32) {
    %c0_i32 = arith.constant 0 : i32
    %c0_i32_0 = arith.constant 0 : i32
    %c0_i32_1 = arith.constant 0 : i32
    return %arg0, %c0_i32, %c0_i32_0 : i32, i32, i32
  }
  func.func @transform_7(%arg0: i32) -> (i32, i32, i32) {
    %c0_i32 = arith.constant 0 : i32
    %c0_i32_0 = arith.constant 0 : i32
    %c0_i32_1 = arith.constant 0 : i32
    return %arg0, %c0_i32, %c0_i32_0 : i32, i32, i32
  }
}

</mosaic_0001>

<llo_original>
// kernel: tpu_custom_call.1
$region0: #{tpu_custom_call.1}
  #allocation0 [shape = 'u32[]', space=smem, size = 0x4, offset = 0x4, fixed_abs, tag = 'smem constant byte address 0x4 - core index']
  #allocation1 [shape = 'u32[144,128]{1,0:T(1,128)}', space=vmem, size = 0x12000, scoped, tag = 'internal scratch']
  %s0 = inlined_call_operand.hbm [shape: f32[2,8,128], index: 0, kind: input, shape index: {}]
  %s1 = inlined_call_operand.hbm [shape: f32[2,16,128], index: 1, kind: input, shape index: {}]
  %s2 = inlined_call_operand.hbm [shape: f32[128,128], index: 2, kind: input, shape index: {}]
  %s3 = inlined_call_operand.vmem [shape: f32[1,128], index: 3, kind: input, shape index: {}]
  %s4 = inlined_call_operand.hbm [shape: f32[128,128], index: 4, kind: input, shape index: {}]
  %s5 = inlined_call_operand.vmem [shape: f32[1,128], index: 5, kind: input, shape index: {}]
  %s6 = inlined_call_operand.hbm [shape: f32[2,8,128], index: 6, kind: output, shape index: {0}]
  %s7 = inlined_call_operand.hbm [shape: f32[2,16,128], index: 7, kind: output, shape index: {1}]
  %8 = xla_tuple %s6, %s7
  %s9 = sld [smem:[#allocation0]]
  $region81: #{tpu_custom_call.1} parent=0
    _
  %s11 = ssub.s32 1, %s9
  %s12 = scalar_select 0, %s11, %s9
  $region1: #{tpu_custom_call.1} parent=0
    #allocation2 [shape = 'u8[8192]{0}', space=vmem, size = 0x2000, scoped, tag = 'input window, operand 0']
    #allocation3 [shape = 's32[2]{0}', space=sflag, size = 0x8, scoped, tag = 'scoped memory for tpu_custom_call.1']
    #allocation4 [shape = 's32[2]{0}', space=sflag, size = 0x8, scoped, tag = 'scoped memory for tpu_custom_call.1']
    #allocation5 [shape = 'u8[16384]{0}', space=vmem, size = 0x4000, scoped, tag = 'input window, operand 1']
    #allocation6 [shape = 's32[2]{0}', space=sflag, size = 0x8, scoped, tag = 'scoped memory for tpu_custom_call.1']
    #allocation7 [shape = 'u8[65536]{0}', space=vmem, size = 0x10000, scoped, tag = 'input window, operand 2, single buffered']
    #allocation8 [shape = 'u8[65536]{0}', space=vmem, size = 0x10000, scoped, tag = 'input window, operand 4, single buffered']
    #allocation9 [shape = 's32[1]{0}', space=sflag, size = 0x4, scoped, tag = 'scoped memory for tpu_custom_call.1']
    #allocation10 [shape = 'u8[8192]{0}', space=vmem, size = 0x2000, scoped, tag = 'output window, operand 0']
    #allocation11 [shape = 'u8[16384]{0}', space=vmem, size = 0x4000, scoped, tag = 'output window, operand 1']
    #allocation12 [shape = 's32[2]{0}', space=sflag, size = 0x8, scoped, tag = 'scoped memory for tpu_custom_call.1']
    %13 = vsyncpa [#allocation3], 0
    %s14 = scalar_lea.sflag [#allocation3], 1
    %15 = vsyncpa %s14, 0
    %16 = vsyncpa [#allocation6], 0
    %s17 = scalar_lea.sflag [#allocation6], 1
    %18 = vsyncpa %s17, 0
    %19 = vsyncpa [#allocation9], 0
    %20 = vsyncpa [#allocation4], 0
    %s21 = scalar_lea.sflag [#allocation4], 1
    %22 = vsyncpa %s21, 0
    %23 = vsyncpa [#allocation12], 0
    %s24 = scalar_lea.sflag [#allocation12], 1
    %25 = vsyncpa %s24, 0
    loop: start=0, step=1, limit=4
    $region2: #{tpu_custom_call.1} parent=1 // loop_pre_header
      _
    $region3: #{tpu_custom_call.1} parent=1 // loop_header
      %s27 = sphi 0, %s31
      %p28 = scmp.ge.s32.totalorder %s27, 4
      %s37 = sphi 0, %s39
      %s40 = sphi 0, %s37
      %s41 = sphi 0, %s40
      %s57 = sphi 0, %s41
      %s63 = sphi 0, %s65
      %s66 = sphi 0, %s63
      %s67 = sphi 0, %s66
      %s83 = sphi 0, %s67
      %s87 = sphi 0, %s87
      %s89 = sphi 0, %s87
      %s90 = sphi 0, %s89
      %s104 = sphi 0, %s90
      %s108 = sphi 0, %s108
      %s110 = sphi 0, %s108
      %s111 = sphi 0, %s110
      %s125 = sphi 0, %s111
      %s129 = sphi 0, %s129
      %s131 = sphi 0, %s129
      %s132 = sphi 0, %s131
      %s146 = sphi 0, %s132
      %s150 = sphi 0, %s150
      %s152 = sphi 0, %s150
      %s153 = sphi 0, %s152
      %s167 = sphi 0, %s153
      %s173 = sphi 0, %s175
      %s176 = sphi 0, %s173
      %s177 = sphi 0, %s176
      %s193 = sphi 0, %s177
      %s199 = sphi 0, %s201
      %s202 = sphi 0, %s199
      %s203 = sphi 0, %s202
      %s219 = sphi 0, %s203
    $region4: #{tpu_custom_call.1} parent=1 // loop_header_branch
      %30 = sbr.rel (%p28) target = $region8
    $region5: #{tpu_custom_call.1} parent=1 // loop_body
      %s32 = ssub.s32 %s27, 1
      %s33 = ssub.s32 %s27, 2
      %s34 = sadd.s32 %s27, 1
      %s35 = ssub.s32 %s27, %s34
      %p36 = scmp.eq.s32.totalorder %s35, 0
      %s38 = sadd.s32 %s37, 1
      %s39 = scalar_select %p36, %s37, %s38
      %p42 = pneg %p36
      %p43 = scmp.eq.s32.totalorder %s27, 1
      %p44 = por %p42, %p43
      %p45 = scmp.ne.s32.totalorder %s37, %s40
      %p46 = scmp.eq.s32.totalorder %s27, 0
      %p47 = por %p45, %p46
      %p48 = scmp.ne.s32.totalorder %s37, %s40
      %p49 = scmp.eq.s32.totalorder %s32, 1
      %p50 = por %p48, %p49
      %p51 = scmp.ne.s32.totalorder %s40, %s41
      %p52 = scmp.eq.s32.totalorder %s32, 0
      %p53 = por %p51, %p52
      %p54 = scmp.ne.s32.totalorder %s40, %s41
      %p55 = scmp.eq.s32.totalorder %s33, 1
      %p56 = por %p54, %p55
      %p58 = scmp.ne.s32.totalorder %s41, %s57
      %p59 = scmp.eq.s32.totalorder %s33, 0
      %p60 = por %p58, %p59
      %s61 = ssub.s32 %s27, %s34
      %p62 = scmp.eq.s32.totalorder %s61, 0
      %s64 = sadd.s32 %s63, 1
      %s65 = scalar_select %p62, %s63, %s64
      %p68 = pneg %p62
      %p69 = scmp.eq.s32.totalorder %s27, 1
      %p70 = por %p68, %p69
      %p71 = scmp.ne.s32.totalorder %s63, %s66
      %p72 = scmp.eq.s32.totalorder %s27, 0
      %p73 = por %p71, %p72
      %p74 = scmp.ne.s32.totalorder %s63, %s66
      %p75 = scmp.eq.s32.totalorder %s32, 1
      %p76 = por %p74, %p75
      %p77 = scmp.ne.s32.totalorder %s66, %s67
      %p78 = scmp.eq.s32.totalorder %s32, 0
      %p79 = por %p77, %p78
      %p80 = scmp.ne.s32.totalorder %s66, %s67
      %p81 = scmp.eq.s32.totalorder %s33, 1
      %p82 = por %p80, %p81
      %p84 = scmp.ne.s32.totalorder %s67, %s83
      %p85 = scmp.eq.s32.totalorder %s33, 0
      %p86 = por %p84, %p85
      %s88 = sadd.s32 %s87, 1
      %p91 = scmp.eq.s32.totalorder %s27, 1
      %p92 = scmp.ne.s32.totalorder %s87, %s89
      %p93 = scmp.eq.s32.totalorder %s27, 0
      %p94 = por %p92, %p93
      %p95 = scmp.ne.s32.totalorder %s87, %s89
      %p96 = scmp.eq.s32.totalorder %s32, 1
      %p97 = por %p95, %p96
      %p98 = scmp.ne.s32.totalorder %s89, %s90
      %p99 = scmp.eq.s32.totalorder %s32, 0
      %p100 = por %p98, %p99
      %p101 = scmp.ne.s32.totalorder %s89, %s90
      %p102 = scmp.eq.s32.totalorder %s33, 1
      %p103 = por %p101, %p102
      %p105 = scmp.ne.s32.totalorder %s90, %s104
      %p106 = scmp.eq.s32.totalorder %s33, 0
      %p107 = por %p105, %p106
      %s109 = sadd.s32 %s108, 1
      %p112 = scmp.eq.s32.totalorder %s27, 1
      %p113 = scmp.ne.s32.totalorder %s108, %s110
      %p114 = scmp.eq.s32.totalorder %s27, 0
      %p115 = por %p113, %p114
      %p116 = scmp.ne.s32.totalorder %s108, %s110
      %p117 = scmp.eq.s32.totalorder %s32, 1
      %p118 = por %p116, %p117
      %p119 = scmp.ne.s32.totalorder %s110, %s111
      %p120 = scmp.eq.s32.totalorder %s32, 0
      %p121 = por %p119, %p120
      %p122 = scmp.ne.s32.totalorder %s110, %s111
      %p123 = scmp.eq.s32.totalorder %s33, 1
      %p124 = por %p122, %p123
      %p126 = scmp.ne.s32.totalorder %s111, %s125
      %p127 = scmp.eq.s32.totalorder %s33, 0
      %p128 = por %p126, %p127
      %s130 = sadd.s32 %s129, 1
      %p133 = scmp.eq.s32.totalorder %s27, 1
      %p134 = scmp.ne.s32.totalorder %s129, %s131
      %p135 = scmp.eq.s32.totalorder %s27, 0
      %p136 = por %p134, %p135
      %p137 = scmp.ne.s32.totalorder %s129, %s131
      %p138 = scmp.eq.s32.totalorder %s32, 1
      %p139 = por %p137, %p138
      %p140 = scmp.ne.s32.totalorder %s131, %s132
      %p141 = scmp.eq.s32.totalorder %s32, 0
      %p142 = por %p140, %p141
      %p143 = scmp.ne.s32.totalorder %s131, %s132
      %p144 = scmp.eq.s32.totalorder %s33, 1
      %p145 = por %p143, %p144
      %p147 = scmp.ne.s32.totalorder %s132, %s146
      %p148 = scmp.eq.s32.totalorder %s33, 0
      %p149 = por %p147, %p148
      %s151 = sadd.s32 %s150, 1
      %p154 = scmp.eq.s32.totalorder %s27, 1
      %p155 = scmp.ne.s32.totalorder %s150, %s152
      %p156 = scmp.eq.s32.totalorder %s27, 0
      %p157 = por %p155, %p156
      %p158 = scmp.ne.s32.totalorder %s150, %s152
      %p159 = scmp.eq.s32.totalorder %s32, 1
      %p160 = por %p158, %p159
      %p161 = scmp.ne.s32.totalorder %s152, %s153
      %p162 = scmp.eq.s32.totalorder %s32, 0
      %p163 = por %p161, %p162
      %p164 = scmp.ne.s32.totalorder %s152, %s153
      %p165 = scmp.eq.s32.totalorder %s33, 1
      %p166 = por %p164, %p165
      %p168 = scmp.ne.s32.totalorder %s153, %s167
      %p169 = scmp.eq.s32.totalorder %s33, 0
      %p170 = por %p168, %p169
      %s171 = ssub.s32 %s27, %s34
      %p172 = scmp.eq.s32.totalorder %s171, 0
      %s174 = sadd.s32 %s173, 1
      %s175 = scalar_select %p172, %s173, %s174
      %p178 = pneg %p172
      %p179 = scmp.eq.s32.totalorder %s27, 1
      %p180 = por %p178, %p179
      %p181 = scmp.ne.s32.totalorder %s173, %s176
      %p182 = scmp.eq.s32.totalorder %s27, 0
      %p183 = por %p181, %p182
      %p184 = scmp.ne.s32.totalorder %s173, %s176
      %p185 = scmp.eq.s32.totalorder %s32, 1
      %p186 = por %p184, %p185
      %p187 = scmp.ne.s32.totalorder %s176, %s177
      %p188 = scmp.eq.s32.totalorder %s32, 0
      %p189 = por %p187, %p188
      %p190 = scmp.ne.s32.totalorder %s176, %s177
      %p191 = scmp.eq.s32.totalorder %s33, 1
      %p192 = por %p190, %p191
      %p194 = scmp.ne.s32.totalorder %s177, %s193
      %p195 = scmp.eq.s32.totalorder %s33, 0
      %p196 = por %p194, %p195
      %s197 = ssub.s32 %s27, %s34
      %p198 = scmp.eq.s32.totalorder %s197, 0
      %s200 = sadd.s32 %s199, 1
      %s201 = scalar_select %p198, %s199, %s200
      %p204 = pneg %p198
      %p205 = scmp.eq.s32.totalorder %s27, 1
      %p206 = por %p204, %p205
      %p207 = scmp.ne.s32.totalorder %s199, %s202
      %p208 = scmp.eq.s32.totalorder %s27, 0
      %p209 = por %p207, %p208
      %p210 = scmp.ne.s32.totalorder %s199, %s202
      %p211 = scmp.eq.s32.totalorder %s32, 1
      %p212 = por %p210, %p211
      %p213 = scmp.ne.s32.totalorder %s202, %s203
      %p214 = scmp.eq.s32.totalorder %s32, 0
      %p215 = por %p213, %p214
      %p216 = scmp.ne.s32.totalorder %s202, %s203
      %p217 = scmp.eq.s32.totalorder %s33, 1
      %p218 = por %p216, %p217
      %p220 = scmp.ne.s32.totalorder %s203, %s219
      %p221 = scmp.eq.s32.totalorder %s33, 0
      %p222 = por %p220, %p221
      %p223 = scmp.le.s32.totalorder 1, %s27
      %p224 = scmp.lt.s32.totalorder %s27, 3
      %p225 = pnand %p223, %p224
      %p226 = pneg %p225
      // Predicated region
      $region9: #{tpu_custom_call.1} parent=5 // pred_check
        _
      $region10: #{tpu_custom_call.1} parent=5 // pred_check_branch
        %228 = sbr.rel (%p225) target = $region12
      $region11: #{tpu_custom_call.1} parent=5 // pred_region
        %s229 = ssub.s32 %s27, 1
        // Predicated region
        $region13: #{tpu_custom_call.1} parent=11 // pred_check
          %p230 = pneg %p100
        $region14: #{tpu_custom_call.1} parent=11 // pred_check_branch
          %232 = sbr.rel (%p230) target = $region16
        $region15: #{tpu_custom_call.1} parent=11 // pred_region
          %s234 = ssub.s32 2048, 2048
          %235 = vsyncadd [#allocation6], %s234
          %s236 = sshll.u32 [#allocation7], 4
          %s237 = int_to_ptr.vmem [resolvable:$true] %s236
          %242 = dma.hbm_to_vmem [thread:$0]  %s2, 2048, %s237, [#allocation6], 128, 128, 8
        $region16: #{tpu_custom_call.1} parent=11 // pred_fallthru
          _
        // Predicated region
        $region17: #{tpu_custom_call.1} parent=11 // pred_check
          %p243 = pneg %p121
        $region18: #{tpu_custom_call.1} parent=11 // pred_check_branch
          %245 = sbr.rel (%p243) target = $region20
        $region19: #{tpu_custom_call.1} parent=11 // pred_region
          _
        $region20: #{tpu_custom_call.1} parent=11 // pred_fallthru
          _
        // Predicated region
        $region21: #{tpu_custom_call.1} parent=11 // pred_check
          %p246 = pneg %p142
        $region22: #{tpu_custom_call.1} parent=11 // pred_check_branch
          %248 = sbr.rel (%p246) target = $region24
        $region23: #{tpu_custom_call.1} parent=11 // pred_region
          %s250 = ssub.s32 2048, 2048
          %251 = vsyncadd [#allocation9], %s250
          %s252 = sshll.u32 [#allocation8], 4
          %s253 = int_to_ptr.vmem [resolvable:$true] %s252
          %258 = dma.hbm_to_vmem [thread:$0]  %s4, 2048, %s253, [#allocation9], 128, 128, 8
        $region24: #{tpu_custom_call.1} parent=11 // pred_fallthru
          _
        // Predicated region
        $region25: #{tpu_custom_call.1} parent=11 // pred_check
          %p259 = pneg %p163
        $region26: #{tpu_custom_call.1} parent=11 // pred_check_branch
          %261 = sbr.rel (%p259) target = $region28
        $region27: #{tpu_custom_call.1} parent=11 // pred_region
          _
        $region28: #{tpu_custom_call.1} parent=11 // pred_fallthru
          _
      $region12: #{tpu_custom_call.1} parent=5 // pred_fallthru
        _
      %p262 = scmp.lt.s32.totalorder %s27, 2
      // Predicated region
      $region29: #{tpu_custom_call.1} parent=5 // pred_check
        %p263 = pneg %p262
      $region30: #{tpu_custom_call.1} parent=5 // pred_check_branch
        %265 = sbr.rel (%p263) target = $region32
      $region31: #{tpu_custom_call.1} parent=5 // pred_region
        // Predicated region
        $region33: #{tpu_custom_call.1} parent=31 // pred_check
          %p266 = pneg %p47
        $region34: #{tpu_custom_call.1} parent=31 // pred_check_branch
          %268 = sbr.rel (%p266) target = $region36
        $region35: #{tpu_custom_call.1} parent=31 // pred_region
          %s269 = sand.u32 %s37, 1
          %s270 = scalar_lea.sflag [#allocation3], %s269
          %s271 = sand.u32 %s37, 1
          %s272 = smul.addr %s271, 8
          %s273 = scalar_lea.vmem [#allocation2], %s272
          %s275 = ssub.s32 128, 128
          %276 = vsyncadd %s270, %s275
          %s277 = smul.addr %s27, 128
          %s278 = scalar_lea.hbm %s0, %s277
          %s280 = sshll.u32 %s273, 4
          %s281 = int_to_ptr.vmem [resolvable:$true] %s280
          %283 = dma.hbm_to_vmem [thread:$0]  %s278, 128, %s281, %s270
        $region36: #{tpu_custom_call.1} parent=31 // pred_fallthru
          _
        // Predicated region
        $region37: #{tpu_custom_call.1} parent=31 // pred_check
          %p284 = pneg %p73
        $region38: #{tpu_custom_call.1} parent=31 // pred_check_branch
          %286 = sbr.rel (%p284) target = $region40
        $region39: #{tpu_custom_call.1} parent=31 // pred_region
          %s287 = sand.u32 %s27, 1
          %s288 = scalar_lea.sflag [#allocation6], %s287
          %s289 = sand.u32 %s63, 1
          %s290 = smul.addr %s289, 16
          %s291 = scalar_lea.vmem [#allocation5], %s290
          %s293 = ssub.s32 256, 256
          %294 = vsyncadd %s288, %s293
          %s295 = smul.addr %s27, 2
          %s296 = smul.addr %s295, 128
          %s297 = scalar_lea.hbm %s1, %s296
          %s298 = sshll.u32 %s291, 4
          %s299 = int_to_ptr.vmem [resolvable:$true] %s298
          %304 = dma.hbm_to_vmem [thread:$0]  %s297, 256, %s299, %s288, 128, 128, 8
        $region40: #{tpu_custom_call.1} parent=31 // pred_fallthru
          _
      $region32: #{tpu_custom_call.1} parent=5 // pred_fallthru
        _
      %p305 = scmp.le.s32.totalorder 1, %s27
      %p306 = scmp.lt.s32.totalorder %s27, 3
      %p307 = pnand %p305, %p306
      %p308 = pneg %p307
      // Predicated region
      $region41: #{tpu_custom_call.1} parent=5 // pred_check
        _
      $region42: #{tpu_custom_call.1} parent=5 // pred_check_branch
        %310 = sbr.rel (%p307) target = $region44
      $region43: #{tpu_custom_call.1} parent=5 // pred_region
        %s311 = ssub.s32 %s27, 1
        %s312 = sand.u32 %s40, 1
        %s313 = scalar_lea.sflag [#allocation3], %s312
        %s314 = sand.u32 %s40, 1
        %s315 = smul.addr %s314, 8
        %s316 = scalar_lea.vmem [#allocation2], %s315
        // Predicated region
        $region45: #{tpu_custom_call.1} parent=43 // pred_check
          %p317 = pneg %p53
        $region46: #{tpu_custom_call.1} parent=43 // pred_check_branch
          %319 = sbr.rel (%p317) target = $region48
        $region47: #{tpu_custom_call.1} parent=43 // pred_region
          %320 = dma.done %s313, 128
        $region48: #{tpu_custom_call.1} parent=43 // pred_fallthru
          _
        %s321 = sand.u32 %s32, 1
        %s322 = scalar_lea.sflag [#allocation6], %s321
        %s323 = sand.u32 %s66, 1
        %s324 = smul.addr %s323, 16
        %s325 = scalar_lea.vmem [#allocation5], %s324
        // Predicated region
        $region49: #{tpu_custom_call.1} parent=43 // pred_check
          %p326 = pneg %p79
        $region50: #{tpu_custom_call.1} parent=43 // pred_check_branch
          %328 = sbr.rel (%p326) target = $region52
        $region51: #{tpu_custom_call.1} parent=43 // pred_region
          %329 = dma.done %s322, 256
        $region52: #{tpu_custom_call.1} parent=43 // pred_fallthru
          _
        // Predicated region
        $region53: #{tpu_custom_call.1} parent=43 // pred_check
          %p330 = pneg %p100
        $region54: #{tpu_custom_call.1} parent=43 // pred_check_branch
          %332 = sbr.rel (%p330) target = $region56
        $region55: #{tpu_custom_call.1} parent=43 // pred_region
          %333 = dma.done [#allocation6], 2048
        $region56: #{tpu_custom_call.1} parent=43 // pred_fallthru
          _
        // Predicated region
        $region57: #{tpu_custom_call.1} parent=43 // pred_check
          %p334 = pneg %p142
        $region58: #{tpu_custom_call.1} parent=43 // pred_check_branch
          %336 = sbr.rel (%p334) target = $region60
        $region59: #{tpu_custom_call.1} parent=43 // pred_region
          %337 = dma.done [#allocation9], 2048
        $region60: #{tpu_custom_call.1} parent=43 // pred_fallthru
          _
        %s338 = sand.u32 %s40, 1
        %s339 = scalar_lea.sflag [#allocation3], %s338
        %s340 = sand.u32 %s40, 1
        %s341 = smul.addr %s340, 8
        %s342 = scalar_lea.vmem [#allocation2], %s341
        %p343 = pneg %p53
        %p344 = pneg %p50
        %s345 = sand.u32 %s32, 1
        %s346 = scalar_lea.sflag [#allocation6], %s345
        %s347 = sand.u32 %s66, 1
        %s348 = smul.addr %s347, 16
        %s349 = scalar_lea.vmem [#allocation5], %s348
        %p350 = pneg %p79
        %p351 = pneg %p76
        %p352 = pneg %p100
        %p353 = pneg %p97
        %p354 = pneg %p121
        %p355 = pneg %p118
        %p356 = pneg %p142
        %p357 = pneg %p139
        %p358 = pneg %p163
        %p359 = pneg %p160
        %p360 = pneg %p189
        %p361 = pneg %p186
        %s362 = sand.u32 %s176, 1
        %s363 = scalar_lea.sflag [#allocation4], %s362
        %s364 = sand.u32 %s176, 1
        %s365 = smul.addr %s364, 8
        %s366 = scalar_lea.vmem [#allocation10], %s365
        %p367 = pneg %p215
        %p368 = pneg %p212
        %s369 = sand.u32 %s202, 1
        %s370 = scalar_lea.sflag [#allocation12], %s369
        %s371 = sand.u32 %s202, 1
        %s372 = smul.addr %s371, 16
        %s373 = scalar_lea.vmem [#allocation11], %s372
        %v374 = vld [vmem:[%s316] sm:$0xff]
        %v375 = vld [vmem:[%s325] sm:$0xff]
        %v376 = vld [vmem:[%s325 + $0x8] sm:$0xff]
        %v377 = vld [vmem:[#allocation7] sm:$0xff]
        %v378 = vld [vmem:[#allocation7 + $0x8] sm:$0xff]
        %v379 = vld [vmem:[#allocation7 + $0x10] sm:$0xff]
        %v380 = vld [vmem:[#allocation7 + $0x18] sm:$0xff]
        %v381 = vld [vmem:[#allocation7 + $0x20] sm:$0xff]
        %v382 = vld [vmem:[#allocation7 + $0x28] sm:$0xff]
        %v383 = vld [vmem:[#allocation7 + $0x30] sm:$0xff]
        %v384 = vld [vmem:[#allocation7 + $0x38] sm:$0xff]
        %v385 = vld [vmem:[#allocation7 + $0x40] sm:$0xff]
        %v386 = vld [vmem:[#allocation7 + $0x48] sm:$0xff]
        %v387 = vld [vmem:[#allocation7 + $0x50] sm:$0xff]
        %v388 = vld [vmem:[#allocation7 + $0x58] sm:$0xff]
        %v389 = vld [vmem:[#allocation7 + $0x60] sm:$0xff]
        %v390 = vld [vmem:[#allocation7 + $0x68] sm:$0xff]
        %v391 = vld [vmem:[#allocation7 + $0x70] sm:$0xff]
        %v392 = vld [vmem:[#allocation7 + $0x78] sm:$0xff]
        %v393 = vld [vmem:[#allocation8] sm:$0xff]
        %v394 = vld [vmem:[#allocation8 + $0x8] sm:$0xff]
        %v395 = vld [vmem:[#allocation8 + $0x10] sm:$0xff]
        %v396 = vld [vmem:[#allocation8 + $0x18] sm:$0xff]
        %v397 = vld [vmem:[#allocation8 + $0x20] sm:$0xff]
        %v398 = vld [vmem:[#allocation8 + $0x28] sm:$0xff]
        %v399 = vld [vmem:[#allocation8 + $0x30] sm:$0xff]
        %v400 = vld [vmem:[#allocation8 + $0x38] sm:$0xff]
        %v401 = vld [vmem:[#allocation8 + $0x40] sm:$0xff]
        %v402 = vld [vmem:[#allocation8 + $0x48] sm:$0xff]
        %v403 = vld [vmem:[#allocation8 + $0x50] sm:$0xff]
        %v404 = vld [vmem:[#allocation8 + $0x58] sm:$0xff]
        %v405 = vld [vmem:[#allocation8 + $0x60] sm:$0xff]
        %v406 = vld [vmem:[#allocation8 + $0x68] sm:$0xff]
        %v407 = vld [vmem:[#allocation8 + $0x70] sm:$0xff]
        %v408 = vld [vmem:[#allocation8 + $0x78] sm:$0xff]
        %v409 = vld [vmem:[%s3] sm:$0x1]
        %v411 = vlaneseq
        %v412 = vshrl.u32 %v411, 7
        %v413 = vsub.s32 0, %v412
        %v414 = vrot.slane %v409, %v413
        %416 = vmatprep.subr.mxu0 0.0
        %417 = vmatpush1.msra.mxu0 %v377
        %418 = vmatprep.subr.mxu0 0.0
        %419 = vmatpush1.msra.mxu0 %v378
        %420 = vmatprep.subr.mxu0 0.0
        %421 = vmatpush1.msra.mxu0 %v379
        %422 = vmatprep.subr.mxu0 0.0
        %423 = vmatpush1.msra.mxu0 %v380
        %424 = vmatprep.subr.mxu0 0.0
        %425 = vmatpush1.msra.mxu0 %v381
        %426 = vmatprep.subr.mxu0 0.0
        %427 = vmatpush1.msra.mxu0 %v382
        %428 = vmatprep.subr.mxu0 0.0
        %429 = vmatpush1.msra.mxu0 %v383
        %430 = vmatprep.subr.mxu0 0.0
        %431 = vmatpush1.msra.mxu0 %v384
        %432 = vmatprep.subr.mxu0 0.0
        %433 = vmatpush1.msra.mxu0 %v385
        %434 = vmatprep.subr.mxu0 0.0
        %435 = vmatpush1.msra.mxu0 %v386
        %436 = vmatprep.subr.mxu0 0.0
        %437 = vmatpush1.msra.mxu0 %v387
        %438 = vmatprep.subr.mxu0 0.0
        %439 = vmatpush1.msra.mxu0 %v388
        %440 = vmatprep.subr.mxu0 0.0
        %441 = vmatpush1.msra.mxu0 %v389
        %442 = vmatprep.subr.mxu0 0.0
        %443 = vmatpush1.msra.mxu0 %v390
        %444 = vmatprep.subr.mxu0 0.0
        %445 = vmatpush1.msra.mxu0 %v391
        %446 = vmatprep.subr.mxu0 0.0
        %447 = vmatpush1.msra.mxu0 %v392
        %448 = vmatprep.subr.mxu0 0.0
        %449 = vmatpush1.msra.mxu0 0.0
        %450 = vmatprep.subr.mxu0 0.0
        %451 = vmatpush1.msra.mxu0 0.0
        %452 = vmatprep.subr.mxu0 0.0
        %453 = vmatpush1.msra.mxu0 0.0
        %454 = vmatprep.subr.mxu0 0.0
        %455 = vmatpush1.msra.mxu0 0.0
        %456 = vmatprep.subr.mxu0 0.0
        %457 = vmatpush1.msra.mxu0 0.0
        %458 = vmatprep.subr.mxu0 0.0
        %459 = vmatpush1.msra.mxu0 0.0
        %460 = vmatprep.subr.mxu0 0.0
        %461 = vmatpush1.msra.mxu0 0.0
        %462 = vmatprep.subr.mxu0 0.0
        %463 = vmatpush1.msra.mxu0 0.0
        %464 = vmatprep.subr.mxu0 0.0
        %465 = vmatpush1.msra.mxu0 0.0
        %466 = vmatprep.subr.mxu0 0.0
        %467 = vmatpush1.msra.mxu0 0.0
        %468 = vmatprep.subr.mxu0 0.0
        %469 = vmatpush1.msra.mxu0 0.0
        %470 = vmatprep.subr.mxu0 0.0
        %471 = vmatpush1.msra.mxu0 0.0
        %472 = vmatprep.subr.mxu0 0.0
        %473 = vmatpush1.msra.mxu0 0.0
        %474 = vmatprep.subr.mxu0 0.0
        %475 = vmatpush1.msra.mxu0 0.0
        %476 = vmatprep.subr.mxu0 0.0
        %477 = vmatpush1.msra.mxu0 0.0
        %478 = vmatprep.subr.mxu0 0.0
        %479 = vmatpush1.msra.mxu0 0.0
        %480 = vmatprep.mubr.f32.mxu0 0.0
        %481 = vmatmul.mubr.f32.gmra.mrb[0].mxu0 %v374
        %v482 = vpop.f32.mrb[0].mxu0
        %v483 = vadd.f32 %v414, %v482
        %v484 = vpop.f32.mrb[0].mxu0
        %485 = vdwg.mxu0
        %v486 = vld [vmem:[%s5] sm:$0x1]
        %v488 = vlaneseq
        %v489 = vshrl.u32 %v488, 7
        %v490 = vsub.s32 0, %v489
        %v491 = vrot.slane %v486, %v490
        %493 = vmatprep.subr.mxu0 0.0
        %494 = vmatpush1.msra.mxu0 %v393
        %495 = vmatprep.subr.mxu0 0.0
        %496 = vmatpush1.msra.mxu0 %v394
        %497 = vmatprep.subr.mxu0 0.0
        %498 = vmatpush1.msra.mxu0 %v395
        %499 = vmatprep.subr.mxu0 0.0
        %500 = vmatpush1.msra.mxu0 %v396
        %501 = vmatprep.subr.mxu0 0.0
        %502 = vmatpush1.msra.mxu0 %v397
        %503 = vmatprep.subr.mxu0 0.0
        %504 = vmatpush1.msra.mxu0 %v398
        %505 = vmatprep.subr.mxu0 0.0
        %506 = vmatpush1.msra.mxu0 %v399
        %507 = vmatprep.subr.mxu0 0.0
        %508 = vmatpush1.msra.mxu0 %v400
        %509 = vmatprep.subr.mxu0 0.0
        %510 = vmatpush1.msra.mxu0 %v401
        %511 = vmatprep.subr.mxu0 0.0
        %512 = vmatpush1.msra.mxu0 %v402
        %513 = vmatprep.subr.mxu0 0.0
        %514 = vmatpush1.msra.mxu0 %v403
        %515 = vmatprep.subr.mxu0 0.0
        %516 = vmatpush1.msra.mxu0 %v404
        %517 = vmatprep.subr.mxu0 0.0
        %518 = vmatpush1.msra.mxu0 %v405
        %519 = vmatprep.subr.mxu0 0.0
        %520 = vmatpush1.msra.mxu0 %v406
        %521 = vmatprep.subr.mxu0 0.0
        %522 = vmatpush1.msra.mxu0 %v407
        %523 = vmatprep.subr.mxu0 0.0
        %524 = vmatpush1.msra.mxu0 %v408
        %525 = vmatprep.subr.mxu0 0.0
        %526 = vmatpush1.msra.mxu0 0.0
        %527 = vmatprep.subr.mxu0 0.0
        %528 = vmatpush1.msra.mxu0 0.0
        %529 = vmatprep.subr.mxu0 0.0
        %530 = vmatpush1.msra.mxu0 0.0
        %531 = vmatprep.subr.mxu0 0.0
        %532 = vmatpush1.msra.mxu0 0.0
        %533 = vmatprep.subr.mxu0 0.0
        %534 = vmatpush1.msra.mxu0 0.0
        %535 = vmatprep.subr.mxu0 0.0
        %536 = vmatpush1.msra.mxu0 0.0
        %537 = vmatprep.subr.mxu0 0.0
        %538 = vmatpush1.msra.mxu0 0.0
        %539 = vmatprep.subr.mxu0 0.0
        %540 = vmatpush1.msra.mxu0 0.0
        %541 = vmatprep.subr.mxu0 0.0
        %542 = vmatpush1.msra.mxu0 0.0
        %543 = vmatprep.subr.mxu0 0.0
        %544 = vmatpush1.msra.mxu0 0.0
        %545 = vmatprep.subr.mxu0 0.0
        %546 = vmatpush1.msra.mxu0 0.0
        %547 = vmatprep.subr.mxu0 0.0
        %548 = vmatpush1.msra.mxu0 0.0
        %549 = vmatprep.subr.mxu0 0.0
        %550 = vmatpush1.msra.mxu0 0.0
        %551 = vmatprep.subr.mxu0 0.0
        %552 = vmatpush1.msra.mxu0 0.0
        %553 = vmatprep.subr.mxu0 0.0
        %554 = vmatpush1.msra.mxu0 0.0
        %555 = vmatprep.subr.mxu0 0.0
        %556 = vmatpush1.msra.mxu0 0.0
        %557 = vmatprep.mubr.f32.mxu0 0.0
        %558 = vmatmul.mubr.f32.gmra.mrb[0].mxu0 %v375
        %v559 = vpop.f32.mrb[0].mxu0
        %v560 = vadd.f32 %v491, %v559
        %v561 = vpop.f32.mrb[0].mxu0
        %562 = vmatprep.mubr.f32.mxu0 0.0
        %563 = vmatmul.mubr.f32.gmra.mrb[0].mxu0 %v376
        %v564 = vpop.f32.mrb[0].mxu0
        %v565 = vadd.f32 %v491, %v564
        %v566 = vpop.f32.mrb[0].mxu0
        %567 = vdwg.mxu0
        %568 = vmatprep.subr.mxu0 0.0
        %569 = vmatpush1.xpose.msra.mxu0 %v560
        %570 = vmatprep.subr.mxu0 0.0
        %571 = vmatpush1.xpose.msra.mxu0 %v565
        %572 = vmatprep.subr.mxu0 0.0
        %573 = vmatpush1.xpose.msra.mxu0 0.0
        %574 = vmatprep.subr.mxu0 0.0
        %575 = vmatpush1.xpose.msra.mxu0 0.0
        %576 = vmatprep.subr.mxu0 0.0
        %577 = vmatpush1.xpose.msra.mxu0 0.0
        %578 = vmatprep.subr.mxu0 0.0
        %579 = vmatpush1.xpose.msra.mxu0 0.0
        %580 = vmatprep.subr.mxu0 0.0
        %581 = vmatpush1.xpose.msra.mxu0 0.0
        %582 = vmatprep.subr.mxu0 0.0
        %583 = vmatpush1.xpose.msra.mxu0 0.0
        %584 = vmatprep.subr.mxu0 0.0
        %585 = vmatpush1.xpose.msra.mxu0 0.0
        %586 = vmatprep.subr.mxu0 0.0
        %587 = vmatpush1.xpose.msra.mxu0 0.0
        %588 = vmatprep.subr.mxu0 0.0
        %589 = vmatpush1.xpose.msra.mxu0 0.0
        %590 = vmatprep.subr.mxu0 0.0
        %591 = vmatpush1.xpose.msra.mxu0 0.0
        %592 = vmatprep.subr.mxu0 0.0
        %593 = vmatpush1.xpose.msra.mxu0 0.0
        %594 = vmatprep.subr.mxu0 0.0
        %595 = vmatpush1.xpose.msra.mxu0 0.0
        %596 = vmatprep.subr.mxu0 0.0
        %597 = vmatpush1.xpose.msra.mxu0 0.0
        %598 = vmatprep.subr.mxu0 0.0
        %599 = vmatpush1.xpose.msra.mxu0 0.0
        %600 = vmatprep.subr.mxu0 0.0
        %601 = vmatpush1.xpose.msra.mxu0 0.0
        %602 = vmatprep.subr.mxu0 0.0
        %603 = vmatpush1.xpose.msra.mxu0 0.0
        %604 = vmatprep.subr.mxu0 0.0
        %605 = vmatpush1.xpose.msra.mxu0 0.0
        %606 = vmatprep.subr.mxu0 0.0
        %607 = vmatpush1.xpose.msra.mxu0 0.0
        %608 = vmatprep.subr.mxu0 0.0
        %609 = vmatpush1.xpose.msra.mxu0 0.0
        %610 = vmatprep.subr.mxu0 0.0
        %611 = vmatpush1.xpose.msra.mxu0 0.0
        %612 = vmatprep.subr.mxu0 0.0
        %613 = vmatpush1.xpose.msra.mxu0 0.0
        %614 = vmatprep.subr.mxu0 0.0
        %615 = vmatpush1.xpose.msra.mxu0 0.0
        %616 = vmatprep.subr.mxu0 0.0
        %617 = vmatpush1.xpose.msra.mxu0 0.0
        %618 = vmatprep.subr.mxu0 0.0
        %619 = vmatpush1.xpose.msra.mxu0 0.0
        %620 = vmatprep.subr.mxu0 0.0
        %621 = vmatpush1.xpose.msra.mxu0 0.0
        %622 = vmatprep.subr.mxu0 0.0
        %623 = vmatpush1.xpose.msra.mxu0 0.0
        %624 = vmatprep.subr.mxu0 0.0
        %625 = vmatpush1.xpose.msra.mxu0 0.0
        %626 = vmatprep.subr.mxu0 0.0
        %627 = vmatpush1.xpose.msra.mxu0 0.0
        %628 = vmatprep.subr.mxu0 0.0
        %629 = vmatpush1.xpose.msra.mxu0 0.0
        %630 = vmatprep.subr.mxu0 0.0
        %631 = vmatpush1.xpose.msra.mxu0 0.0
        %632 = vmatprep.mubr.f32.mxu0 0.0
        %633 = vmatmul.mubr.f32.gmra.mrb[0].mxu0 %v483
        %v634 = vpop.f32.mrb[0].mxu0
        %v635 = vadd.f32 0.0, %v634
        %v636 = vpop.f32.mrb[0].mxu0
        %637 = vdwg.mxu0
        %vm638 = vcmask 130048
        %v639 = vsel %vm638, %v635, -inf
        %640 = vmax.xlane.f32.xlu0 %v639
        %v641 = vpop.xlane.xlu0 %640
        %v642 = vsub.f32 %v635, %v641
        %v643 = vmul.f32 %v642, 1.442695
        %v644 = vpow.pop %v643
        %v645 = vsel %vm638, %v644, 0.0
        %646 = vadd.xlane.f32.xlu0 %v645
        %v647 = vpop.xlane.xlu0 %646
        %v648 = vrcp.pop %v647
        %v649 = vmul.f32 %v644, %v648
        %v650 = vrot.slane %v639, 4
        %v651 = vmax.f32 %v639, %v650
        %v652 = vrot.slane %v651, 2
        %v653 = vmax.f32 %v651, %v652
        %v654 = vrot.slane %v653, 1
        %v655 = vmax.f32 %v653, %v654
        %v656 = vsub.f32 %v635, %v655
        %v657 = vmul.f32 %v656, 1.442695
        %v658 = vpow.pop %v657
        %v659 = vsel %vm638, %v658, 0.0
        %v660 = vrot.slane %v659, 4
        %v661 = vadd.f32 %v659, %v660
        %v662 = vrot.slane %v661, 2
        %v663 = vadd.f32 %v661, %v662
        %v664 = vrot.slane %v663, 1
        %v665 = vadd.f32 %v663, %v664
        %v666 = vrcp.pop %v665
        %v667 = vmul.f32 %v658, %v666
        %v669 = vsel %vm638, %v649, 0
        %671 = vmatprep.subr.mxu0 0.0
        %672 = vmatpush1.msra.mxu0 %v375
        %673 = vmatprep.subr.mxu0 0.0
        %674 = vmatpush1.msra.mxu0 %v376
        %675 = vmatprep.subr.mxu0 0.0
        %676 = vmatpush1.msra.mxu0 0.0
        %677 = vmatprep.subr.mxu0 0.0
        %678 = vmatpush1.msra.mxu0 0.0
        %679 = vmatprep.subr.mxu0 0.0
        %680 = vmatpush1.msra.mxu0 0.0
        %681 = vmatprep.subr.mxu0 0.0
        %682 = vmatpush1.msra.mxu0 0.0
        %683 = vmatprep.subr.mxu0 0.0
        %684 = vmatpush1.msra.mxu0 0.0
        %685 = vmatprep.subr.mxu0 0.0
        %686 = vmatpush1.msra.mxu0 0.0
        %687 = vmatprep.subr.mxu0 0.0
        %688 = vmatpush1.msra.mxu0 0.0
        %689 = vmatprep.subr.mxu0 0.0
        %690 = vmatpush1.msra.mxu0 0.0
        %691 = vmatprep.subr.mxu0 0.0
        %692 = vmatpush1.msra.mxu0 0.0
        %693 = vmatprep.subr.mxu0 0.0
        %694 = vmatpush1.msra.mxu0 0.0
        %695 = vmatprep.subr.mxu0 0.0
        %696 = vmatpush1.msra.mxu0 0.0
        %697 = vmatprep.subr.mxu0 0.0
        %698 = vmatpush1.msra.mxu0 0.0
        %699 = vmatprep.subr.mxu0 0.0
        %700 = vmatpush1.msra.mxu0 0.0
        %701 = vmatprep.subr.mxu0 0.0
        %702 = vmatpush1.msra.mxu0 0.0
        %703 = vmatprep.subr.mxu0 0.0
        %704 = vmatpush1.msra.mxu0 0.0
        %705 = vmatprep.subr.mxu0 0.0
        %706 = vmatpush1.msra.mxu0 0.0
        %707 = vmatprep.subr.mxu0 0.0
        %708 = vmatpush1.msra.mxu0 0.0
        %709 = vmatprep.subr.mxu0 0.0
        %710 = vmatpush1.msra.mxu0 0.0
        %711 = vmatprep.subr.mxu0 0.0
        %712 = vmatpush1.msra.mxu0 0.0
        %713 = vmatprep.subr.mxu0 0.0
        %714 = vmatpush1.msra.mxu0 0.0
        %715 = vmatprep.subr.mxu0 0.0
        %716 = vmatpush1.msra.mxu0 0.0
        %717 = vmatprep.subr.mxu0 0.0
        %718 = vmatpush1.msra.mxu0 0.0
        %719 = vmatprep.subr.mxu0 0.0
        %720 = vmatpush1.msra.mxu0 0.0
        %721 = vmatprep.subr.mxu0 0.0
        %722 = vmatpush1.msra.mxu0 0.0
        %723 = vmatprep.subr.mxu0 0.0
        %724 = vmatpush1.msra.mxu0 0.0
        %725 = vmatprep.subr.mxu0 0.0
        %726 = vmatpush1.msra.mxu0 0.0
        %727 = vmatprep.subr.mxu0 0.0
        %728 = vmatpush1.msra.mxu0 0.0
        %729 = vmatprep.subr.mxu0 0.0
        %730 = vmatpush1.msra.mxu0 0.0
        %731 = vmatprep.subr.mxu0 0.0
        %732 = vmatpush1.msra.mxu0 0.0
        %733 = vmatprep.subr.mxu0 0.0
        %734 = vmatpush1.msra.mxu0 0.0
        %735 = vmatprep.mubr.f32.mxu0 0.0
        %736 = vmatmul.mubr.f32.gmra.mrb[0].mxu0 %v669
        %v737 = vpop.f32.mrb[0].mxu0
        %v738 = vadd.f32 0.0, %v737
        %v739 = vpop.f32.mrb[0].mxu0
        %740 = vdwg.mxu0
        %741 = vxpose.xlu0.b32.start [1/16] %v667, 128
        %742 = vxpose.xlu0.b32.cont [2/16] 0.0, 128
        %743 = vxpose.xlu0.b32.cont [3/16] 0.0, 128
        %744 = vxpose.xlu0.b32.cont [4/16] 0.0, 128
        %745 = vxpose.xlu0.b32.cont [5/16] 0.0, 128
        %746 = vxpose.xlu0.b32.cont [6/16] 0.0, 128
        %747 = vxpose.xlu0.b32.cont [7/16] 0.0, 128
        %748 = vxpose.xlu0.b32.cont [8/16] 0.0, 128
        %749 = vxpose.xlu0.b32.cont [9/16] 0.0, 128
        %750 = vxpose.xlu0.b32.cont [10/16] 0.0, 128
        %751 = vxpose.xlu0.b32.cont [11/16] 0.0, 128
        %752 = vxpose.xlu0.b32.cont [12/16] 0.0, 128
        %753 = vxpose.xlu0.b32.cont [13/16] 0.0, 128
        %754 = vxpose.xlu0.b32.cont [14/16] 0.0, 128
        %755 = vxpose.xlu0.b32.cont [15/16] 0.0, 128
        %756 = vxpose.xlu0.b32.end [16/16] 0.0, 128
        %v757 = vpop.trf.xlu0
        %v758 = vpop.trf.xlu0
        %v759 = vpop.trf.xlu0
        %v760 = vpop.trf.xlu0
        %v761 = vpop.trf.xlu0
        %v762 = vpop.trf.xlu0
        %v763 = vpop.trf.xlu0
        %v764 = vpop.trf.xlu0
        %v765 = vpop.trf.xlu0
        %v766 = vpop.trf.xlu0
        %v767 = vpop.trf.xlu0
        %v768 = vpop.trf.xlu0
        %v769 = vpop.trf.xlu0
        %v770 = vpop.trf.xlu0
        %v771 = vpop.trf.xlu0
        %v772 = vpop.trf.xlu0
        %vm773 = vcmask 64512
        %v775 = vsel %vm773, %v757, 0
        %v778 = vsel %vm773, %v758, 0
        %780 = vmatprep.subr.mxu0 0.0
        %781 = vmatpush1.msra.mxu0 %v374
        %782 = vmatprep.subr.mxu0 0.0
        %783 = vmatpush1.msra.mxu0 0.0
        %784 = vmatprep.subr.mxu0 0.0
        %785 = vmatpush1.msra.mxu0 0.0
        %786 = vmatprep.subr.mxu0 0.0
        %787 = vmatpush1.msra.mxu0 0.0
        %788 = vmatprep.subr.mxu0 0.0
        %789 = vmatpush1.msra.mxu0 0.0
        %790 = vmatprep.subr.mxu0 0.0
        %791 = vmatpush1.msra.mxu0 0.0
        %792 = vmatprep.subr.mxu0 0.0
        %793 = vmatpush1.msra.mxu0 0.0
        %794 = vmatprep.subr.mxu0 0.0
        %795 = vmatpush1.msra.mxu0 0.0
        %796 = vmatprep.subr.mxu0 0.0
        %797 = vmatpush1.msra.mxu0 0.0
        %798 = vmatprep.subr.mxu0 0.0
        %799 = vmatpush1.msra.mxu0 0.0
        %800 = vmatprep.subr.mxu0 0.0
        %801 = vmatpush1.msra.mxu0 0.0
        %802 = vmatprep.subr.mxu0 0.0
        %803 = vmatpush1.msra.mxu0 0.0
        %804 = vmatprep.subr.mxu0 0.0
        %805 = vmatpush1.msra.mxu0 0.0
        %806 = vmatprep.subr.mxu0 0.0
        %807 = vmatpush1.msra.mxu0 0.0
        %808 = vmatprep.subr.mxu0 0.0
        %809 = vmatpush1.msra.mxu0 0.0
        %810 = vmatprep.subr.mxu0 0.0
        %811 = vmatpush1.msra.mxu0 0.0
        %812 = vmatprep.subr.mxu0 0.0
        %813 = vmatpush1.msra.mxu0 0.0
        %814 = vmatprep.subr.mxu0 0.0
        %815 = vmatpush1.msra.mxu0 0.0
        %816 = vmatprep.subr.mxu0 0.0
        %817 = vmatpush1.msra.mxu0 0.0
        %818 = vmatprep.subr.mxu0 0.0
        %819 = vmatpush1.msra.mxu0 0.0
        %820 = vmatprep.subr.mxu0 0.0
        %821 = vmatpush1.msra.mxu0 0.0
        %822 = vmatprep.subr.mxu0 0.0
        %823 = vmatpush1.msra.mxu0 0.0
        %824 = vmatprep.subr.mxu0 0.0
        %825 = vmatpush1.msra.mxu0 0.0
        %826 = vmatprep.subr.mxu0 0.0
        %827 = vmatpush1.msra.mxu0 0.0
        %828 = vmatprep.subr.mxu0 0.0
        %829 = vmatpush1.msra.mxu0 0.0
        %830 = vmatprep.subr.mxu0 0.0
        %831 = vmatpush1.msra.mxu0 0.0
        %832 = vmatprep.subr.mxu0 0.0
        %833 = vmatpush1.msra.mxu0 0.0
        %834 = vmatprep.subr.mxu0 0.0
        %835 = vmatpush1.msra.mxu0 0.0
        %836 = vmatprep.subr.mxu0 0.0
        %837 = vmatpush1.msra.mxu0 0.0
        %838 = vmatprep.subr.mxu0 0.0
        %839 = vmatpush1.msra.mxu0 0.0
        %840 = vmatprep.subr.mxu0 0.0
        %841 = vmatpush1.msra.mxu0 0.0
        %842 = vmatprep.subr.mxu0 0.0
        %843 = vmatpush1.msra.mxu0 0.0
        %844 = vmatprep.mubr.f32.mxu0 0.0
        %845 = vmatmul.mubr.f32.gmra.mrb[0].mxu0 %v775
        %v846 = vpop.f32.mrb[0].mxu0
        %v847 = vadd.f32 0.0, %v846
        %v848 = vpop.f32.mrb[0].mxu0
        %849 = vmatprep.mubr.f32.mxu0 0.0
        %850 = vmatmul.mubr.f32.gmra.mrb[0].mxu0 %v778
        %v851 = vpop.f32.mrb[0].mxu0
        %v852 = vadd.f32 0.0, %v851
        %v853 = vpop.f32.mrb[0].mxu0
        %854 = vdwg.mxu0
        %855 = vst [vmem:[%s366] sm:$0xff] %v738
        %856 = vst [vmem:[%s373] sm:$0xff] %v847
        %857 = vst [vmem:[%s373 + $0x8] sm:$0xff] %v852
        %s858 = sand.u32 %s176, 1
        %s859 = scalar_lea.sflag [#allocation4], %s858
        %s860 = sand.u32 %s176, 1
        %s861 = smul.addr %s860, 8
        %s862 = scalar_lea.vmem [#allocation10], %s861
        %s863 = sand.u32 %s202, 1
        %s864 = scalar_lea.sflag [#allocation12], %s863
        %s865 = sand.u32 %s202, 1
        %s866 = smul.addr %s865, 16
        %s867 = scalar_lea.vmem [#allocation11], %s866
        // Predicated region
        $region61: #{tpu_custom_call.1} parent=43 // pred_check
          %p868 = pneg %p186
        $region62: #{tpu_custom_call.1} parent=43 // pred_check_branch
          %870 = sbr.rel (%p868) target = $region64
        $region63: #{tpu_custom_call.1} parent=43 // pred_region
          %s872 = ssub.s32 128, 128
          %873 = vsyncadd %s859, %s872
          %s874 = smul.addr %s32, 128
          %s875 = scalar_lea.hbm %s6, %s874
          %s877 = sshll.u32 %s862, 4
          %s878 = int_to_ptr.vmem [resolvable:$true] %s877
          %880 = dma.vmem_to_hbm [thread:$0]  %s878, 128, %s875, %s859
        $region64: #{tpu_custom_call.1} parent=43 // pred_fallthru
          _
        // Predicated region
        $region65: #{tpu_custom_call.1} parent=43 // pred_check
          %p881 = pneg %p212
        $region66: #{tpu_custom_call.1} parent=43 // pred_check_branch
          %883 = sbr.rel (%p881) target = $region68
        $region67: #{tpu_custom_call.1} parent=43 // pred_region
          %s885 = ssub.s32 256, 256
          %886 = vsyncadd %s864, %s885
          %s887 = smul.addr %s32, 2
          %s888 = smul.addr %s887, 128
          %s889 = scalar_lea.hbm %s7, %s888
          %s890 = sshll.u32 %s867, 4
          %s891 = int_to_ptr.vmem [resolvable:$true] %s890
          %896 = dma.vmem_to_hbm [thread:$0]  %s891, 256, %s889, %s864, 128, 128, 8
        $region68: #{tpu_custom_call.1} parent=43 // pred_fallthru
          _
      $region44: #{tpu_custom_call.1} parent=5 // pred_fallthru
        _
      %p897 = scmp.le.s32.totalorder 2, %s27
      // Predicated region
      $region69: #{tpu_custom_call.1} parent=5 // pred_check
        %p898 = pneg %p897
      $region70: #{tpu_custom_call.1} parent=5 // pred_check_branch
        %900 = sbr.rel (%p898) target = $region72
      $region71: #{tpu_custom_call.1} parent=5 // pred_region
        %s901 = ssub.s32 %s27, 2
        // Predicated region
        $region73: #{tpu_custom_call.1} parent=71 // pred_check
          %p902 = pneg %p192
        $region74: #{tpu_custom_call.1} parent=71 // pred_check_branch
          %904 = sbr.rel (%p902) target = $region76
        $region75: #{tpu_custom_call.1} parent=71 // pred_region
          %s905 = sand.u32 %s177, 1
          %s906 = scalar_lea.sflag [#allocation4], %s905
          %s907 = sand.u32 %s177, 1
          %s908 = smul.addr %s907, 8
          %s909 = scalar_lea.vmem [#allocation10], %s908
          %910 = dma.done %s906, 128
        $region76: #{tpu_custom_call.1} parent=71 // pred_fallthru
          _
        // Predicated region
        $region77: #{tpu_custom_call.1} parent=71 // pred_check
          %p911 = pneg %p218
        $region78: #{tpu_custom_call.1} parent=71 // pred_check_branch
          %913 = sbr.rel (%p911) target = $region80
        $region79: #{tpu_custom_call.1} parent=71 // pred_region
          %s914 = sand.u32 %s203, 1
          %s915 = scalar_lea.sflag [#allocation12], %s914
          %s916 = sand.u32 %s203, 1
          %s917 = smul.addr %s916, 16
          %s918 = scalar_lea.vmem [#allocation11], %s917
          %919 = dma.done %s915, 256
        $region80: #{tpu_custom_call.1} parent=71 // pred_fallthru
          _
      $region72: #{tpu_custom_call.1} parent=5 // pred_fallthru
        _
    $region6: #{tpu_custom_call.1} parent=1 // loop_footer
      %s31 = sadd.s32 1, %s27
    $region7: #{tpu_custom_call.1} parent=1 // loop_footer_branch
      %26 = sbr.rel target = $region3
    $region8: #{tpu_custom_call.1} parent=1 // loop_exit
      _
    %920 = vsyncpa [#allocation3], 1
    %s921 = scalar_lea.sflag [#allocation3], 1
    %922 = vsyncpa %s921, 1
    %923 = vsyncpa [#allocation6], 1
    %s924 = scalar_lea.sflag [#allocation6], 1
    %925 = vsyncpa %s924, 1
    %926 = vsyncpa [#allocation9], 1
    %927 = vsyncpa [#allocation4], 1
    %s928 = scalar_lea.sflag [#allocation4], 1
    %929 = vsyncpa %s928, 1
    %930 = vsyncpa [#allocation12], 1
    %s931 = scalar_lea.sflag [#allocation12], 1
    %932 = vsyncpa %s931, 1

</llo_original>
